<compile_context>
chip_gen: v5e
topology: v5e:2x2
jax: 0.10.0
libtpu: 0.0.40
codegen_flags: <defaults>
</compile_context>

<pallas_src>
import functools
import math

import jax
import jax.numpy as jnp
from jax.experimental import pallas as pl
from jax.experimental.pallas import tpu as pltpu

LOG_STD_MAX = 2.0
LOG_STD_MIN = -10.0


def _policy_kernel(*refs, num_pre, batch, n_nodes, out_size):
    """Fully fused GraphGaussianPolicy.forward for the whole batch.

    refs = (adj, adj_t, x, noise,
            w_0, b_0, ..., w_{num_pre-1}, b_{num_pre-1},   # pre_network layers
            w_head, b_head,                                # fused mu|log_sig head
            out)

    Each fused weight w has shape (3*Fin, Fout):
        rows [0:Fin]       = W_in^T
        rows [Fin:2*Fin]   = W_out^T
        rows [2*Fin:3*Fin] = W_loop^T
    Each fused bias b has shape (1, Fout) = b_in + b_out + b_loop.
    The head additionally concatenates mu | log_sig along Fout -> (3*Fhid, 2*out).
    Activations are carried flat as (B*N, F) so every weight matmul runs once
    over all B*N rows.
    """
    adj_ref, adjt_ref, x_ref, noise_ref = refs[:4]
    n_layers = num_pre + 1
    p_refs = refs[4:4 + 2 * n_layers]
    out_ref = refs[4 + 2 * n_layers]

    # 0/1 adjacency stored as bf16 in HBM (half the DMA); exact upcast to f32.
    adj = adj_ref[...].astype(jnp.float32)      # (B, N, N)
    adj_t = adjt_ref[...].astype(jnp.float32)   # (B, N, N)
    # TODO(synk): drop the separate adj_t input once a trans_a dot_general is
    # verified (pl.lower_as_mlir) not to insert an in-kernel XLU transpose.

    def fused_graph_linear(h, w_ref, b_ref, activate):
        # h: (B*N, Fin) f32
        agg_in, agg_out = [], []
        for b in range(batch):  # tiny static batch -> unrolled adjacency dots
            hb = h[b * n_nodes:(b + 1) * n_nodes, :]
            agg_in.append(jnp.dot(adj[b], hb, preferred_element_type=jnp.float32))
            agg_out.append(jnp.dot(adj_t[b], hb, preferred_element_type=jnp.float32))
        agg_in = jnp.concatenate(agg_in, axis=0)     # (B*N, Fin)
        agg_out = jnp.concatenate(agg_out, axis=0)   # (B*N, Fin)
        # ONE K=3*Fin weight matmul over all B*N rows (vs 3 small dots/graph).
        packed = jnp.concatenate([agg_in, agg_out, h], axis=-1)  # (B*N, 3*Fin)
        y = jnp.dot(packed, w_ref[...], preferred_element_type=jnp.float32)
        y = y + b_ref[...]
        if activate:
            y = jnp.where(y > 0, y, 0.01 * y)  # F.leaky_relu default slope
        return y

    h = x_ref[...]  # (B*N, Fin)
    for li in range(num_pre):
        h = fused_graph_linear(h, p_refs[2 * li], p_refs[2 * li + 1], True)

    # Fused mu | log_sig head: one pass producing (B*N, 2*out_size).
    y = fused_graph_linear(h, p_refs[2 * num_pre], p_refs[2 * num_pre + 1], False)
    mu = y[:, 0:out_size]
    ls = y[:, out_size:2 * out_size]
    log_sig = jnp.tanh(ls)
    log_sig = LOG_STD_MIN + 0.5 * (LOG_STD_MAX - LOG_STD_MIN) * (log_sig + 1.0)
    pi = jnp.tanh(mu + noise_ref[...] * jnp.exp(log_sig))
    out_ref[...] = pi.astype(out_ref.dtype)  # single lane-dense (B*N, out) store


# ------------------------ parameter folding (in XLA) -------------------------
def fold_graph_linear_params(p):
    """PyTorch (Fout, Fin) weights -> fused (3*Fin, Fout) weight + (1, Fout) bias."""
    w_cat = jnp.concatenate([p["w_in"].T, p["w_out"].T, p["w_loop"].T], axis=0)
    b_sum = (p["b_in"] + p["b_out"] + p["b_loop"]).reshape(1, -1)
    return w_cat.astype(jnp.float32), b_sum.astype(jnp.float32)


def fold_policy_params(params):
    """Returns [(w,b) for pre layers] + [(w_head, b_head)] with mu|log_sig fused."""
    fused = [fold_graph_linear_params(p) for p in params["pre"]]
    w_mu, b_mu = fold_graph_linear_params(params["mu"])
    w_ls, b_ls = fold_graph_linear_params(params["log_sig"])
    fused.append((jnp.concatenate([w_mu, w_ls], axis=1),
                  jnp.concatenate([b_mu, b_ls], axis=1)))
    return fused


# --------------------------------- wrapper -----------------------------------
def graph_gaussian_policy_forward(adj, x, noise, fused_params):
    """fused_params: output of fold_policy_params."""
    B, N, fin = x.shape
    out_size = fused_params[-1][0].shape[1] // 2
    num_pre = len(fused_params) - 1

    # 0/1 adjacency -> bf16 (lossless) to halve its HBM/VMEM footprint.
    adj_b = adj.astype(jnp.bfloat16)
    adj_t = jnp.swapaxes(adj_b, -1, -2)  # one-time XLA transpose

    x_flat = x.reshape(B * N, fin).astype(jnp.float32)
    noise_flat = noise.reshape(B * N, out_size).astype(jnp.float32)

    flat = []
    for w, b in fused_params:
        flat += [w, b]

    kernel = functools.partial(_policy_kernel, num_pre=num_pre, batch=B,
                               n_nodes=N, out_size=out_size)

    def full_spec(shape):
        return pl.BlockSpec(shape, lambda i, _r=len(shape): (0,) * _r)

    in_specs = ([full_spec(adj_b.shape), full_spec(adj_t.shape),
                 full_spec(x_flat.shape), full_spec(noise_flat.shape)]
                + [full_spec(p.shape) for p in flat])

    # TODO(synk): for non-toy B/N, put graphs (or adjacency row tiles) on a
    # leading "parallel" grid axis (2 TensorCores on v7x), stream adj/adj_t as
    # bf16 row tiles sized against v7x's 64 MiB VMEM (~half the v5e/v6e tile),
    # and set vmem_limit_bytes explicitly; keep bf16/fp8 (not int8) since the
    # v7x MXU has no integer path.  At B=2, N=8 everything fits VMEM and a
    # single grid step (one launch, no per-step tax) is fastest.
    out_flat = pl.pallas_call(
        kernel,
        out_shape=jax.ShapeDtypeStruct((B * N, out_size), jnp.float32),
        grid=(1,),
        in_specs=in_specs,
        out_specs=full_spec((B * N, out_size)),
        compiler_params=pltpu.CompilerParams(
            dimension_semantics=("arbitrary",)),
    )(adj_b, adj_t, x_flat, noise_flat, *flat)
    return out_flat.reshape(B, N, out_size)


# ---------------- init (mimics nn.Linear default init, PyTorch convention) ---
def init_graph_linear(key, in_size, out_size):
    bound = 1.0 / math.sqrt(in_size)
    ks = jax.random.split(key, 6)
    u = lambda k, shape: jax.random.uniform(
        k, shape, dtype=jnp.float32, minval=-bound, maxval=bound)
    return {
        "w_in":   u(ks[0], (out_size, in_size)), "b_in":   u(ks[1], (out_size,)),
        "w_out":  u(ks[2], (out_size, in_size)), "b_out":  u(ks[3], (out_size,)),
        "w_loop": u(ks[4], (out_size, in_size)), "b_loop": u(ks[5], (out_size,)),
    }


def init_policy(key, in_size, out_size, hidden_layers):
    params = {"pre": []}
    sizes = [in_size] + list(hidden_layers)
    for i in range(len(hidden_layers)):
        key, sub = jax.random.split(key)
        params["pre"].append(init_graph_linear(sub, sizes[i], sizes[i + 1]))
    key, k_mu = jax.random.split(key)
    key, k_ls = jax.random.split(key)
    params["mu"] = init_graph_linear(k_mu, hidden_layers[-1], out_size)
    params["log_sig"] = init_graph_linear(k_ls, hidden_layers[-1], out_size)
    return params


# ---------------- pure-JAX reference matching the PyTorch forward ------------
def _reference_forward(adj, x, noise, params):
    def gl(s, p, activate):
        a_in = jnp.einsum("bij,bjf->bif", adj, s)
        a_out = jnp.einsum("bji,bjf->bif", adj, s)
        y = (a_in @ p["w_in"].T + p["b_in"]
             + a_out @ p["w_out"].T + p["b_out"]
             + s @ p["w_loop"].T + p["b_loop"])
        return jnp.where(y > 0, y, 0.01 * y) if activate else y

    h = x
    for p in params["pre"]:
        h = gl(h, p, True)
    mu = gl(h, params["mu"], False)
    log_sig = jnp.tanh(gl(h, params["log_sig"], False))
    log_sig = LOG_STD_MIN + 0.5 * (LOG_STD_MAX - LOG_STD_MIN) * (log_sig + 1.0)
    return jnp.tanh(mu + noise * jnp.exp(log_sig))


if __name__ == "__main__":
    key = jax.random.PRNGKey(0)
    B, N = 2, 8
    in_size, out_size = 16, 4
    hidden_layers = [32, 32]  # stand-in for Config.hidden_layers

    k_adj, k_x, k_noise, k_params = jax.random.split(key, 4)
    adj = (jax.random.uniform(k_adj, (B, N, N)) < 0.4).astype(jnp.float32)
    x = jax.random.normal(k_x, (B, N, in_size), dtype=jnp.float32)
    # torch.randn_like(mu): standard-normal noise generated host-side so the
    # kernel and the reference use identical randomness.
    noise = jax.random.normal(k_noise, (B, N, out_size), dtype=jnp.float32)

    params = init_policy(k_params, in_size, out_size, hidden_layers)
    fused = fold_policy_params(params)

    out = graph_gaussian_policy_forward(adj, x, noise, fused)
    out = jax.block_until_ready(out)

    ref = _reference_forward(adj, x, noise, params)
    assert out.shape == (B, N, out_size), out.shape
    assert jnp.allclose(out, ref, atol=1e-4, rtol=1e-4), "mismatch vs reference"

    print("KERNEL_OK")
</pallas_src>

<mosaic_0001>
module attributes {stable_mosaic.version = 11 : i64} {
  func.func @_policy_kernel(%arg0: i32, %arg1: memref<2x8x8xbf16, #tpu.memory_space<vmem>>, %arg2: memref<2x8x8xbf16, #tpu.memory_space<vmem>>, %arg3: memref<16x16xf32, #tpu.memory_space<vmem>>, %arg4: memref<16x4xf32, #tpu.memory_space<vmem>>, %arg5: memref<48x32xf32, #tpu.memory_space<vmem>>, %arg6: memref<1x32xf32, #tpu.memory_space<vmem>>, %arg7: memref<96x32xf32, #tpu.memory_space<vmem>>, %arg8: memref<1x32xf32, #tpu.memory_space<vmem>>, %arg9: memref<96x8xf32, #tpu.memory_space<vmem>>, %arg10: memref<1x8xf32, #tpu.memory_space<vmem>>, %arg11: memref<16x4xf32, #tpu.memory_space<vmem>>) attributes {dimension_semantics = [#tpu.dimension_semantics<arbitrary>], iteration_bounds = array<i64: 1>, scalar_prefetch = 0 : i64, scratch_operands = 0 : i64, tpu.core_type = #tpu.core_type<tc>, window_params = [{pipeline_mode = #tpu.pipeline_mode<synchronous>, transform_indices = @transform_0, window_bounds = array<i64: 2, 8, 8>}, {pipeline_mode = #tpu.pipeline_mode<synchronous>, transform_indices = @transform_1, window_bounds = array<i64: 2, 8, 8>}, {pipeline_mode = #tpu.pipeline_mode<synchronous>, transform_indices = @transform_2, window_bounds = array<i64: 16, 16>}, {pipeline_mode = #tpu.pipeline_mode<synchronous>, transform_indices = @transform_3, window_bounds = array<i64: 16, 4>}, {pipeline_mode = #tpu.pipeline_mode<synchronous>, transform_indices = @transform_4, window_bounds = array<i64: 48, 32>}, {pipeline_mode = #tpu.pipeline_mode<synchronous>, transform_indices = @transform_5, window_bounds = array<i64: 1, 32>}, {pipeline_mode = #tpu.pipeline_mode<synchronous>, transform_indices = @transform_6, window_bounds = array<i64: 96, 32>}, {pipeline_mode = #tpu.pipeline_mode<synchronous>, transform_indices = @transform_7, window_bounds = array<i64: 1, 32>}, {pipeline_mode = #tpu.pipeline_mode<synchronous>, transform_indices = @transform_8, window_bounds = array<i64: 96, 8>}, {pipeline_mode = #tpu.pipeline_mode<synchronous>, transform_indices = @transform_9, window_bounds = array<i64: 1, 8>}, {pipeline_mode = #tpu.pipeline_mode<synchronous>, transform_indices = @transform_10, window_bounds = array<i64: 16, 4>}]} {
    %c0 = arith.constant 0 : index
    %c0_0 = arith.constant 0 : index
    %c0_1 = arith.constant 0 : index
    %0 = vector.load %arg1[%c0, %c0_0, %c0_1] : memref<2x8x8xbf16, #tpu.memory_space<vmem>>, vector<2x8x8xbf16>
    %1 = arith.extf %0 : vector<2x8x8xbf16> to vector<2x8x8xf32>
    %c0_2 = arith.constant 0 : index
    %c0_3 = arith.constant 0 : index
    %c0_4 = arith.constant 0 : index
    %2 = vector.load %arg2[%c0_2, %c0_3, %c0_4] : memref<2x8x8xbf16, #tpu.memory_space<vmem>>, vector<2x8x8xbf16>
    %3 = arith.extf %2 : vector<2x8x8xbf16> to vector<2x8x8xf32>
    %c0_5 = arith.constant 0 : index
    %c0_6 = arith.constant 0 : index
    %4 = vector.load %arg3[%c0_5, %c0_6] : memref<16x16xf32, #tpu.memory_space<vmem>>, vector<16x16xf32>
    %5 = vector.extract_strided_slice %4 {offsets = [0, 0], sizes = [8, 16], strides = [1, 1]} : vector<16x16xf32> to vector<8x16xf32>
    %6 = vector.extract_strided_slice %1 {offsets = [0, 0, 0], sizes = [1, 8, 8], strides = [1, 1, 1]} : vector<2x8x8xf32> to vector<1x8x8xf32>
    %7 = vector.shape_cast %6 : vector<1x8x8xf32> to vector<8x8xf32>
    %cst = arith.constant dense<0.000000e+00> : vector<8x16xf32>
    %8 = tpu.matmul %7, %5, %cst {dimension_numbers = #tpu.dot_dimension_numbers<[1], [0], [0], [1], [0, 0, 1, 1], [], []>} : vector<8x8xf32>, vector<8x16xf32>, vector<8x16xf32> -> vector<8x16xf32>
    %9 = vector.extract_strided_slice %3 {offsets = [0, 0, 0], sizes = [1, 8, 8], strides = [1, 1, 1]} : vector<2x8x8xf32> to vector<1x8x8xf32>
    %10 = vector.shape_cast %9 : vector<1x8x8xf32> to vector<8x8xf32>
    %cst_7 = arith.constant dense<0.000000e+00> : vector<8x16xf32>
    %11 = tpu.matmul %10, %5, %cst_7 {dimension_numbers = #tpu.dot_dimension_numbers<[1], [0], [0], [1], [0, 0, 1, 1], [], []>} : vector<8x8xf32>, vector<8x16xf32>, vector<8x16xf32> -> vector<8x16xf32>
    %12 = vector.extract_strided_slice %4 {offsets = [8, 0], sizes = [8, 16], strides = [1, 1]} : vector<16x16xf32> to vector<8x16xf32>
    %13 = vector.extract_strided_slice %1 {offsets = [1, 0, 0], sizes = [1, 8, 8], strides = [1, 1, 1]} : vector<2x8x8xf32> to vector<1x8x8xf32>
    %14 = vector.shape_cast %13 : vector<1x8x8xf32> to vector<8x8xf32>
    %cst_8 = arith.constant dense<0.000000e+00> : vector<8x16xf32>
    %15 = tpu.matmul %14, %12, %cst_8 {dimension_numbers = #tpu.dot_dimension_numbers<[1], [0], [0], [1], [0, 0, 1, 1], [], []>} : vector<8x8xf32>, vector<8x16xf32>, vector<8x16xf32> -> vector<8x16xf32>
    %16 = vector.extract_strided_slice %3 {offsets = [1, 0, 0], sizes = [1, 8, 8], strides = [1, 1, 1]} : vector<2x8x8xf32> to vector<1x8x8xf32>
    %17 = vector.shape_cast %16 : vector<1x8x8xf32> to vector<8x8xf32>
    %cst_9 = arith.constant dense<0.000000e+00> : vector<8x16xf32>
    %18 = tpu.matmul %17, %12, %cst_9 {dimension_numbers = #tpu.dot_dimension_numbers<[1], [0], [0], [1], [0, 0, 1, 1], [], []>} : vector<8x8xf32>, vector<8x16xf32>, vector<8x16xf32> -> vector<8x16xf32>
    %19 = tpu.concatenate %8, %15 in 0 : vector<8x16xf32>, vector<8x16xf32> -> vector<16x16xf32>
    %20 = tpu.concatenate %11, %18 in 0 : vector<8x16xf32>, vector<8x16xf32> -> vector<16x16xf32>
    %21 = tpu.concatenate %19, %20, %4 in 1 : vector<16x16xf32>, vector<16x16xf32>, vector<16x16xf32> -> vector<16x48xf32>
    %c0_10 = arith.constant 0 : index
    %c0_11 = arith.constant 0 : index
    %22 = vector.load %arg5[%c0_10, %c0_11] : memref<48x32xf32, #tpu.memory_space<vmem>>, vector<48x32xf32>
    %cst_12 = arith.constant dense<0.000000e+00> : vector<16x32xf32>
    %23 = tpu.matmul %21, %22, %cst_12 {dimension_numbers = #tpu.dot_dimension_numbers<[1], [0], [0], [1], [0, 0, 1, 1], [], []>} : vector<16x48xf32>, vector<48x32xf32>, vector<16x32xf32> -> vector<16x32xf32>
    %c0_13 = arith.constant 0 : index
    %c0_14 = arith.constant 0 : index
    %24 = vector.load %arg6[%c0_13, %c0_14] : memref<1x32xf32, #tpu.memory_space<vmem>>, vector<1x32xf32>
    %25 = vector.broadcast %24 : vector<1x32xf32> to vector<16x32xf32>
    %26 = arith.addf %23, %25 : vector<16x32xf32>
    %cst_15 = arith.constant 0.000000e+00 : f32
    %27 = vector.broadcast %cst_15 : f32 to vector<16x32xf32>
    %28 = arith.cmpf ogt, %26, %27 : vector<16x32xf32>
    %cst_16 = arith.constant 0.00999999977 : f32
    %29 = vector.broadcast %cst_16 : f32 to vector<16x32xf32>
    %30 = arith.mulf %29, %26 : vector<16x32xf32>
    %31 = arith.select %28, %26, %30 : vector<16x32xi1>, vector<16x32xf32>
    %32 = vector.extract_strided_slice %31 {offsets = [0, 0], sizes = [8, 32], strides = [1, 1]} : vector<16x32xf32> to vector<8x32xf32>
    %33 = vector.extract_strided_slice %1 {offsets = [0, 0, 0], sizes = [1, 8, 8], strides = [1, 1, 1]} : vector<2x8x8xf32> to vector<1x8x8xf32>
    %34 = vector.shape_cast %33 : vector<1x8x8xf32> to vector<8x8xf32>
    %cst_17 = arith.constant dense<0.000000e+00> : vector<8x32xf32>
    %35 = tpu.matmul %34, %32, %cst_17 {dimension_numbers = #tpu.dot_dimension_numbers<[1], [0], [0], [1], [0, 0, 1, 1], [], []>} : vector<8x8xf32>, vector<8x32xf32>, vector<8x32xf32> -> vector<8x32xf32>
    %36 = vector.extract_strided_slice %3 {offsets = [0, 0, 0], sizes = [1, 8, 8], strides = [1, 1, 1]} : vector<2x8x8xf32> to vector<1x8x8xf32>
    %37 = vector.shape_cast %36 : vector<1x8x8xf32> to vector<8x8xf32>
    %cst_18 = arith.constant dense<0.000000e+00> : vector<8x32xf32>
    %38 = tpu.matmul %37, %32, %cst_18 {dimension_numbers = #tpu.dot_dimension_numbers<[1], [0], [0], [1], [0, 0, 1, 1], [], []>} : vector<8x8xf32>, vector<8x32xf32>, vector<8x32xf32> -> vector<8x32xf32>
    %39 = vector.extract_strided_slice %31 {offsets = [8, 0], sizes = [8, 32], strides = [1, 1]} : vector<16x32xf32> to vector<8x32xf32>
    %40 = vector.extract_strided_slice %1 {offsets = [1, 0, 0], sizes = [1, 8, 8], strides = [1, 1, 1]} : vector<2x8x8xf32> to vector<1x8x8xf32>
    %41 = vector.shape_cast %40 : vector<1x8x8xf32> to vector<8x8xf32>
    %cst_19 = arith.constant dense<0.000000e+00> : vector<8x32xf32>
    %42 = tpu.matmul %41, %39, %cst_19 {dimension_numbers = #tpu.dot_dimension_numbers<[1], [0], [0], [1], [0, 0, 1, 1], [], []>} : vector<8x8xf32>, vector<8x32xf32>, vector<8x32xf32> -> vector<8x32xf32>
    %43 = vector.extract_strided_slice %3 {offsets = [1, 0, 0], sizes = [1, 8, 8], strides = [1, 1, 1]} : vector<2x8x8xf32> to vector<1x8x8xf32>
    %44 = vector.shape_cast %43 : vector<1x8x8xf32> to vector<8x8xf32>
    %cst_20 = arith.constant dense<0.000000e+00> : vector<8x32xf32>
    %45 = tpu.matmul %44, %39, %cst_20 {dimension_numbers = #tpu.dot_dimension_numbers<[1], [0], [0], [1], [0, 0, 1, 1], [], []>} : vector<8x8xf32>, vector<8x32xf32>, vector<8x32xf32> -> vector<8x32xf32>
    %46 = tpu.concatenate %35, %42 in 0 : vector<8x32xf32>, vector<8x32xf32> -> vector<16x32xf32>
    %47 = tpu.concatenate %38, %45 in 0 : vector<8x32xf32>, vector<8x32xf32> -> vector<16x32xf32>
    %48 = tpu.concatenate %46, %47, %31 in 1 : vector<16x32xf32>, vector<16x32xf32>, vector<16x32xf32> -> vector<16x96xf32>
    %c0_21 = arith.constant 0 : index
    %c0_22 = arith.constant 0 : index
    %49 = vector.load %arg7[%c0_21, %c0_22] : memref<96x32xf32, #tpu.memory_space<vmem>>, vector<96x32xf32>
    %cst_23 = arith.constant dense<0.000000e+00> : vector<16x32xf32>
    %50 = tpu.matmul %48, %49, %cst_23 {dimension_numbers = #tpu.dot_dimension_numbers<[1], [0], [0], [1], [0, 0, 1, 1], [], []>} : vector<16x96xf32>, vector<96x32xf32>, vector<16x32xf32> -> vector<16x32xf32>
    %c0_24 = arith.constant 0 : index
    %c0_25 = arith.constant 0 : index
    %51 = vector.load %arg8[%c0_24, %c0_25] : memref<1x32xf32, #tpu.memory_space<vmem>>, vector<1x32xf32>
    %52 = vector.broadcast %51 : vector<1x32xf32> to vector<16x32xf32>
    %53 = arith.addf %50, %52 : vector<16x32xf32>
    %cst_26 = arith.constant 0.000000e+00 : f32
    %54 = vector.broadcast %cst_26 : f32 to vector<16x32xf32>
    %55 = arith.cmpf ogt, %53, %54 : vector<16x32xf32>
    %cst_27 = arith.constant 0.00999999977 : f32
    %56 = vector.broadcast %cst_27 : f32 to vector<16x32xf32>
    %57 = arith.mulf %56, %53 : vector<16x32xf32>
    %58 = arith.select %55, %53, %57 : vector<16x32xi1>, vector<16x32xf32>
    %59 = vector.extract_strided_slice %58 {offsets = [0, 0], sizes = [8, 32], strides = [1, 1]} : vector<16x32xf32> to vector<8x32xf32>
    %60 = vector.extract_strided_slice %1 {offsets = [0, 0, 0], sizes = [1, 8, 8], strides = [1, 1, 1]} : vector<2x8x8xf32> to vector<1x8x8xf32>
    %61 = vector.shape_cast %60 : vector<1x8x8xf32> to vector<8x8xf32>
    %cst_28 = arith.constant dense<0.000000e+00> : vector<8x32xf32>
    %62 = tpu.matmul %61, %59, %cst_28 {dimension_numbers = #tpu.dot_dimension_numbers<[1], [0], [0], [1], [0, 0, 1, 1], [], []>} : vector<8x8xf32>, vector<8x32xf32>, vector<8x32xf32> -> vector<8x32xf32>
    %63 = vector.extract_strided_slice %3 {offsets = [0, 0, 0], sizes = [1, 8, 8], strides = [1, 1, 1]} : vector<2x8x8xf32> to vector<1x8x8xf32>
    %64 = vector.shape_cast %63 : vector<1x8x8xf32> to vector<8x8xf32>
    %cst_29 = arith.constant dense<0.000000e+00> : vector<8x32xf32>
    %65 = tpu.matmul %64, %59, %cst_29 {dimension_numbers = #tpu.dot_dimension_numbers<[1], [0], [0], [1], [0, 0, 1, 1], [], []>} : vector<8x8xf32>, vector<8x32xf32>, vector<8x32xf32> -> vector<8x32xf32>
    %66 = vector.extract_strided_slice %58 {offsets = [8, 0], sizes = [8, 32], strides = [1, 1]} : vector<16x32xf32> to vector<8x32xf32>
    %67 = vector.extract_strided_slice %1 {offsets = [1, 0, 0], sizes = [1, 8, 8], strides = [1, 1, 1]} : vector<2x8x8xf32> to vector<1x8x8xf32>
    %68 = vector.shape_cast %67 : vector<1x8x8xf32> to vector<8x8xf32>
    %cst_30 = arith.constant dense<0.000000e+00> : vector<8x32xf32>
    %69 = tpu.matmul %68, %66, %cst_30 {dimension_numbers = #tpu.dot_dimension_numbers<[1], [0], [0], [1], [0, 0, 1, 1], [], []>} : vector<8x8xf32>, vector<8x32xf32>, vector<8x32xf32> -> vector<8x32xf32>
    %70 = vector.extract_strided_slice %3 {offsets = [1, 0, 0], sizes = [1, 8, 8], strides = [1, 1, 1]} : vector<2x8x8xf32> to vector<1x8x8xf32>
    %71 = vector.shape_cast %70 : vector<1x8x8xf32> to vector<8x8xf32>
    %cst_31 = arith.constant dense<0.000000e+00> : vector<8x32xf32>
    %72 = tpu.matmul %71, %66, %cst_31 {dimension_numbers = #tpu.dot_dimension_numbers<[1], [0], [0], [1], [0, 0, 1, 1], [], []>} : vector<8x8xf32>, vector<8x32xf32>, vector<8x32xf32> -> vector<8x32xf32>
    %73 = tpu.concatenate %62, %69 in 0 : vector<8x32xf32>, vector<8x32xf32> -> vector<16x32xf32>
    %74 = tpu.concatenate %65, %72 in 0 : vector<8x32xf32>, vector<8x32xf32> -> vector<16x32xf32>
    %75 = tpu.concatenate %73, %74, %58 in 1 : vector<16x32xf32>, vector<16x32xf32>, vector<16x32xf32> -> vector<16x96xf32>
    %c0_32 = arith.constant 0 : index
    %c0_33 = arith.constant 0 : index
    %76 = vector.load %arg9[%c0_32, %c0_33] : memref<96x8xf32, #tpu.memory_space<vmem>>, vector<96x8xf32>
    %cst_34 = arith.constant dense<0.000000e+00> : vector<16x8xf32>
    %77 = tpu.matmul %75, %76, %cst_34 {dimension_numbers = #tpu.dot_dimension_numbers<[1], [0], [0], [1], [0, 0, 1, 1], [], []>} : vector<16x96xf32>, vector<96x8xf32>, vector<16x8xf32> -> vector<16x8xf32>
    %c0_35 = arith.constant 0 : index
    %c0_36 = arith.constant 0 : index
    %78 = vector.load %arg10[%c0_35, %c0_36] : memref<1x8xf32, #tpu.memory_space<vmem>>, vector<1x8xf32>
    %79 = vector.broadcast %78 : vector<1x8xf32> to vector<16x8xf32>
    %80 = arith.addf %77, %79 : vector<16x8xf32>
    %81 = vector.extract_strided_slice %80 {offsets = [0, 0], sizes = [16, 4], strides = [1, 1]} : vector<16x8xf32> to vector<16x4xf32>
    %82 = vector.extract_strided_slice %80 {offsets = [0, 4], sizes = [16, 4], strides = [1, 1]} : vector<16x8xf32> to vector<16x4xf32>
    %83 = math.tanh %82 : vector<16x4xf32>
    %cst_37 = arith.constant 1.000000e+00 : f32
    %84 = vector.broadcast %cst_37 : f32 to vector<16x4xf32>
    %85 = arith.addf %83, %84 : vector<16x4xf32>
    %cst_38 = arith.constant 6.000000e+00 : f32
    %86 = vector.broadcast %cst_38 : f32 to vector<16x4xf32>
    %87 = arith.mulf %86, %85 : vector<16x4xf32>
    %cst_39 = arith.constant -1.000000e+01 : f32
    %88 = vector.broadcast %cst_39 : f32 to vector<16x4xf32>
    %89 = arith.addf %88, %87 : vector<16x4xf32>
    %c0_40 = arith.constant 0 : index
    %c0_41 = arith.constant 0 : index
    %90 = vector.load %arg4[%c0_40, %c0_41] : memref<16x4xf32, #tpu.memory_space<vmem>>, vector<16x4xf32>
    %91 = math.exp %89 : vector<16x4xf32>
    %92 = arith.mulf %90, %91 : vector<16x4xf32>
    %93 = arith.addf %81, %92 : vector<16x4xf32>
    %94 = math.tanh %93 : vector<16x4xf32>
    %c0_42 = arith.constant 0 : index
    %c0_43 = arith.constant 0 : index
    %95 = vector.load %arg11[%c0_42, %c0_43] : memref<16x4xf32, #tpu.memory_space<vmem>>, vector<16x4xf32>
    tpu.vector_store %arg11[%c0_42, %c0_43], %94 {strides = array<i32>} : memref<16x4xf32, #tpu.memory_space<vmem>>, vector<16x4xf32>,
    return
  }
  func.func @transform_0(%arg0: i32) -> (i32, i32, i32) {
    %c0_i32 = arith.constant 0 : i32
    %c0_i32_0 = arith.constant 0 : i32
    %c0_i32_1 = arith.constant 0 : i32
    %c0_i32_2 = arith.constant 0 : i32
    return %c0_i32, %c0_i32_0, %c0_i32_1 : i32, i32, i32
  }
  func.func @transform_1(%arg0: i32) -> (i32, i32, i32) {
    %c0_i32 = arith.constant 0 : i32
    %c0_i32_0 = arith.constant 0 : i32
    %c0_i32_1 = arith.constant 0 : i32
    %c0_i32_2 = arith.constant 0 : i32
    return %c0_i32, %c0_i32_0, %c0_i32_1 : i32, i32, i32
  }
  func.func @transform_2(%arg0: i32) -> (i32, i32) {
    %c0_i32 = arith.constant 0 : i32
    %c0_i32_0 = arith.constant 0 : i32
    %c0_i32_1 = arith.constant 0 : i32
    return %c0_i32, %c0_i32_0 : i32, i32
  }
  func.func @transform_3(%arg0: i32) -> (i32, i32) {
    %c0_i32 = arith.constant 0 : i32
    %c0_i32_0 = arith.constant 0 : i32
    %c0_i32_1 = arith.constant 0 : i32
    return %c0_i32, %c0_i32_0 : i32, i32
  }
  func.func @transform_4(%arg0: i32) -> (i32, i32) {
    %c0_i32 = arith.constant 0 : i32
    %c0_i32_0 = arith.constant 0 : i32
    %c0_i32_1 = arith.constant 0 : i32
    return %c0_i32, %c0_i32_0 : i32, i32
  }
  func.func @transform_5(%arg0: i32) -> (i32, i32) {
    %c0_i32 = arith.constant 0 : i32
    %c0_i32_0 = arith.constant 0 : i32
    %c0_i32_1 = arith.constant 0 : i32
    return %c0_i32, %c0_i32_0 : i32, i32
  }
  func.func @transform_6(%arg0: i32) -> (i32, i32) {
    %c0_i32 = arith.constant 0 : i32
    %c0_i32_0 = arith.constant 0 : i32
    %c0_i32_1 = arith.constant 0 : i32
    return %c0_i32, %c0_i32_0 : i32, i32
  }
  func.func @transform_7(%arg0: i32) -> (i32, i32) {
    %c0_i32 = arith.constant 0 : i32
    %c0_i32_0 = arith.constant 0 : i32
    %c0_i32_1 = arith.constant 0 : i32
    return %c0_i32, %c0_i32_0 : i32, i32
  }
  func.func @transform_8(%arg0: i32) -> (i32, i32) {
    %c0_i32 = arith.constant 0 : i32
    %c0_i32_0 = arith.constant 0 : i32
    %c0_i32_1 = arith.constant 0 : i32
    return %c0_i32, %c0_i32_0 : i32, i32
  }
  func.func @transform_9(%arg0: i32) -> (i32, i32) {
    %c0_i32 = arith.constant 0 : i32
    %c0_i32_0 = arith.constant 0 : i32
    %c0_i32_1 = arith.constant 0 : i32
    return %c0_i32, %c0_i32_0 : i32, i32
  }
  func.func @transform_10(%arg0: i32) -> (i32, i32) {
    %c0_i32 = arith.constant 0 : i32
    %c0_i32_0 = arith.constant 0 : i32
    %c0_i32_1 = arith.constant 0 : i32
    return %c0_i32, %c0_i32_0 : i32, i32
  }
}

</mosaic_0001>

<llo_original>
// kernel: tpu_custom_call.1
$region0: #{tpu_custom_call.1}
  #allocation0 [shape = 'u32[]', space=smem, size = 0x4, offset = 0x4, fixed_abs, tag = 'smem constant byte address 0x4 - core index']
  #allocation1 [shape = 'u32[72,128]{1,0:T(1,128)}', space=vmem, size = 0x9000, scoped, tag = 'internal scratch']
  %s0 = inlined_call_operand.vmem [shape: bf16[2,8,8], index: 0, kind: input, shape index: {}]
  %s1 = inlined_call_operand.vmem [shape: bf16[2,8,8], index: 1, kind: input, shape index: {}]
  %s2 = inlined_call_operand.vmem [shape: f32[16,16], index: 2, kind: input, shape index: {}]
  %s3 = inlined_call_operand.vmem [shape: f32[16,4], index: 3, kind: input, shape index: {}]
  %s4 = inlined_call_operand.vmem [shape: f32[48,32], index: 4, kind: input, shape index: {}]
  %s5 = inlined_call_operand.vmem [shape: f32[1,32], index: 5, kind: input, shape index: {}]
  %s6 = inlined_call_operand.vmem [shape: f32[96,32], index: 6, kind: input, shape index: {}]
  %s7 = inlined_call_operand.vmem [shape: f32[1,32], index: 7, kind: input, shape index: {}]
  %s8 = inlined_call_operand.vmem [shape: f32[96,8], index: 8, kind: input, shape index: {}]
  %s9 = inlined_call_operand.vmem [shape: f32[1,8], index: 9, kind: input, shape index: {}]
  %s10 = inlined_call_operand.vmem [shape: f32[16,4], index: 10, kind: output, shape index: {}]
  %s11 = sld [smem:[#allocation0]]
  $region50: #{tpu_custom_call.1} parent=0
    _
  %s13 = ssub.s32 1, %s11
  %s14 = scalar_select 0, %s13, %s11
  // Predicated region
  $region2: #{tpu_custom_call.1} parent=0 // pred_check
    _
  $region3: #{tpu_custom_call.1} parent=0 // pred_check_branch
    %16 = sbr.rel (0) target = $region5
  $region4: #{tpu_custom_call.1} parent=0 // pred_region
    _
  $region5: #{tpu_custom_call.1} parent=0 // pred_fallthru
    _
  // Predicated region
  $region6: #{tpu_custom_call.1} parent=0 // pred_check
    _
  $region7: #{tpu_custom_call.1} parent=0 // pred_check_branch
    %18 = sbr.rel (0) target = $region9
  $region8: #{tpu_custom_call.1} parent=0 // pred_region
    _
  $region9: #{tpu_custom_call.1} parent=0 // pred_fallthru
    _
  // Predicated region
  $region10: #{tpu_custom_call.1} parent=0 // pred_check
    _
  $region11: #{tpu_custom_call.1} parent=0 // pred_check_branch
    %20 = sbr.rel (0) target = $region13
  $region12: #{tpu_custom_call.1} parent=0 // pred_region
    _
  $region13: #{tpu_custom_call.1} parent=0 // pred_fallthru
    _
  // Predicated region
  $region14: #{tpu_custom_call.1} parent=0 // pred_check
    _
  $region15: #{tpu_custom_call.1} parent=0 // pred_check_branch
    %22 = sbr.rel (0) target = $region17
  $region16: #{tpu_custom_call.1} parent=0 // pred_region
    _
  $region17: #{tpu_custom_call.1} parent=0 // pred_fallthru
    _
  // Predicated region
  $region18: #{tpu_custom_call.1} parent=0 // pred_check
    _
  $region19: #{tpu_custom_call.1} parent=0 // pred_check_branch
    %24 = sbr.rel (0) target = $region21
  $region20: #{tpu_custom_call.1} parent=0 // pred_region
    _
  $region21: #{tpu_custom_call.1} parent=0 // pred_fallthru
    _
  // Predicated region
  $region22: #{tpu_custom_call.1} parent=0 // pred_check
    _
  $region23: #{tpu_custom_call.1} parent=0 // pred_check_branch
    %26 = sbr.rel (0) target = $region25
  $region24: #{tpu_custom_call.1} parent=0 // pred_region
    _
  $region25: #{tpu_custom_call.1} parent=0 // pred_fallthru
    _
  // Predicated region
  $region26: #{tpu_custom_call.1} parent=0 // pred_check
    _
  $region27: #{tpu_custom_call.1} parent=0 // pred_check_branch
    %28 = sbr.rel (0) target = $region29
  $region28: #{tpu_custom_call.1} parent=0 // pred_region
    _
  $region29: #{tpu_custom_call.1} parent=0 // pred_fallthru
    _
  // Predicated region
  $region30: #{tpu_custom_call.1} parent=0 // pred_check
    _
  $region31: #{tpu_custom_call.1} parent=0 // pred_check_branch
    %30 = sbr.rel (0) target = $region33
  $region32: #{tpu_custom_call.1} parent=0 // pred_region
    _
  $region33: #{tpu_custom_call.1} parent=0 // pred_fallthru
    _
  // Predicated region
  $region34: #{tpu_custom_call.1} parent=0 // pred_check
    _
  $region35: #{tpu_custom_call.1} parent=0 // pred_check_branch
    %32 = sbr.rel (0) target = $region37
  $region36: #{tpu_custom_call.1} parent=0 // pred_region
    _
  $region37: #{tpu_custom_call.1} parent=0 // pred_fallthru
    _
  // Predicated region
  $region38: #{tpu_custom_call.1} parent=0 // pred_check
    _
  $region39: #{tpu_custom_call.1} parent=0 // pred_check_branch
    %34 = sbr.rel (0) target = $region41
  $region40: #{tpu_custom_call.1} parent=0 // pred_region
    _
  $region41: #{tpu_custom_call.1} parent=0 // pred_fallthru
    _
  %v35 = vld [vmem:[%s0] sm:$0xf]
  %v36 = vld [vmem:[%s0 + $0x4] sm:$0xf]
  %v37 = vunpack.c.l.bf16 %v35
  %v38 = vunpack.c.l.bf16 %v36
  %v39 = vld [vmem:[%s1] sm:$0xf]
  %v40 = vld [vmem:[%s1 + $0x4] sm:$0xf]
  %v41 = vunpack.c.l.bf16 %v39
  %v42 = vunpack.c.l.bf16 %v40
  %v43 = vld [vmem:[%s2] sm:$0xff]
  %v44 = vld [vmem:[%s2 + $0x8] sm:$0xff]
  %vm45 = vcmask 64512
  %v47 = vsel %vm45, %v37, 0
  %49 = vmatpush.msra.mxu0 0.0
  %50 = vmatpush.msra.mxu0 0.0
  %51 = vmatpush.msra.mxu0 0.0
  %52 = vmatpush.msra.mxu0 0.0
  %53 = vmatpush.msra.mxu0 0.0
  %54 = vmatpush.msra.mxu0 0.0
  %55 = vmatpush.msra.mxu0 0.0
  %56 = vmatpush.msra.mxu0 0.0
  %57 = vmatpush.msra.mxu0 0.0
  %58 = vmatpush.msra.mxu0 0.0
  %59 = vmatpush.msra.mxu0 0.0
  %60 = vmatpush.msra.mxu0 0.0
  %61 = vmatpush.msra.mxu0 0.0
  %62 = vmatpush.msra.mxu0 0.0
  %63 = vmatpush.msra.mxu0 0.0
  %64 = vmatpush.msra.mxu0 %v43
  %65 = vmatmul.f32.gmra.mxu0 %v47
  %v66 = vpop.f32.mrf.mxu0
  %v67 = vadd.f32 0.0, %v66
  %68 = vdwg.mxu0
  %v70 = vsel %vm45, %v41, 0
  %72 = vmatpush.msra.mxu0 0.0
  %73 = vmatpush.msra.mxu0 0.0
  %74 = vmatpush.msra.mxu0 0.0
  %75 = vmatpush.msra.mxu0 0.0
  %76 = vmatpush.msra.mxu0 0.0
  %77 = vmatpush.msra.mxu0 0.0
  %78 = vmatpush.msra.mxu0 0.0
  %79 = vmatpush.msra.mxu0 0.0
  %80 = vmatpush.msra.mxu0 0.0
  %81 = vmatpush.msra.mxu0 0.0
  %82 = vmatpush.msra.mxu0 0.0
  %83 = vmatpush.msra.mxu0 0.0
  %84 = vmatpush.msra.mxu0 0.0
  %85 = vmatpush.msra.mxu0 0.0
  %86 = vmatpush.msra.mxu0 0.0
  %87 = vmatpush.msra.mxu0 %v43
  %88 = vmatmul.f32.gmra.mxu0 %v70
  %v89 = vpop.f32.mrf.mxu0
  %v90 = vadd.f32 0.0, %v89
  %91 = vdwg.mxu0
  %v93 = vsel %vm45, %v38, 0
  %95 = vmatpush.msra.mxu0 0.0
  %96 = vmatpush.msra.mxu0 0.0
  %97 = vmatpush.msra.mxu0 0.0
  %98 = vmatpush.msra.mxu0 0.0
  %99 = vmatpush.msra.mxu0 0.0
  %100 = vmatpush.msra.mxu0 0.0
  %101 = vmatpush.msra.mxu0 0.0
  %102 = vmatpush.msra.mxu0 0.0
  %103 = vmatpush.msra.mxu0 0.0
  %104 = vmatpush.msra.mxu0 0.0
  %105 = vmatpush.msra.mxu0 0.0
  %106 = vmatpush.msra.mxu0 0.0
  %107 = vmatpush.msra.mxu0 0.0
  %108 = vmatpush.msra.mxu0 0.0
  %109 = vmatpush.msra.mxu0 0.0
  %110 = vmatpush.msra.mxu0 %v44
  %111 = vmatmul.f32.gmra.mxu0 %v93
  %v112 = vpop.f32.mrf.mxu0
  %v113 = vadd.f32 0.0, %v112
  %114 = vdwg.mxu0
  %v116 = vsel %vm45, %v42, 0
  %118 = vmatpush.msra.mxu0 0.0
  %119 = vmatpush.msra.mxu0 0.0
  %120 = vmatpush.msra.mxu0 0.0
  %121 = vmatpush.msra.mxu0 0.0
  %122 = vmatpush.msra.mxu0 0.0
  %123 = vmatpush.msra.mxu0 0.0
  %124 = vmatpush.msra.mxu0 0.0
  %125 = vmatpush.msra.mxu0 0.0
  %126 = vmatpush.msra.mxu0 0.0
  %127 = vmatpush.msra.mxu0 0.0
  %128 = vmatpush.msra.mxu0 0.0
  %129 = vmatpush.msra.mxu0 0.0
  %130 = vmatpush.msra.mxu0 0.0
  %131 = vmatpush.msra.mxu0 0.0
  %132 = vmatpush.msra.mxu0 0.0
  %133 = vmatpush.msra.mxu0 %v44
  %134 = vmatmul.f32.gmra.mxu0 %v116
  %v135 = vpop.f32.mrf.mxu0
  %v136 = vadd.f32 0.0, %v135
  %137 = vdwg.mxu0
  %140 = vrot.lane.b32.xlu0 %v90, 16
  %v141 = vpop.permute.xlu0 %140
  %142 = vrot.lane.b32.xlu0 %v136, 16
  %v143 = vpop.permute.xlu0 %142
  %148 = vrot.lane.b32.xlu0 %v43, 32
  %v149 = vpop.permute.xlu0 %148
  %150 = vrot.lane.b32.xlu0 %v44, 32
  %v151 = vpop.permute.xlu0 %150
  %vm154 = vcmask 130048
  %v155 = vsel %vm154, %v67, %v141
  %v156 = vsel %vm154, %v113, %v143
  %vm157 = vcmask 261120
  %v158 = vsel %vm157, %v155, %v149
  %v159 = vsel %vm157, %v156, %v151
  %v160 = vld [vmem:[%s4] sm:$0xff]
  %v161 = vld [vmem:[%s4 + $0x8] sm:$0xff]
  %v162 = vld [vmem:[%s4 + $0x10] sm:$0xff]
  %v163 = vld [vmem:[%s4 + $0x18] sm:$0xff]
  %v164 = vld [vmem:[%s4 + $0x20] sm:$0xff]
  %v165 = vld [vmem:[%s4 + $0x28] sm:$0xff]
  %v166 = vld [vmem:[%s5] sm:$0x1]
  %v168 = vperm.slane %v166, 0
  %vm170 = vcmask 392192
  %v172 = vsel %vm170, %v158, 0
  %v175 = vsel %vm170, %v159, 0
  %177 = vmatpush.msra.mxu0 0.0
  %178 = vmatpush.msra.mxu0 0.0
  %179 = vmatpush.msra.mxu0 0.0
  %180 = vmatpush.msra.mxu0 0.0
  %181 = vmatpush.msra.mxu0 0.0
  %182 = vmatpush.msra.mxu0 0.0
  %183 = vmatpush.msra.mxu0 0.0
  %184 = vmatpush.msra.mxu0 0.0
  %185 = vmatpush.msra.mxu0 0.0
  %186 = vmatpush.msra.mxu0 0.0
  %187 = vmatpush.msra.mxu0 %v165
  %188 = vmatpush.msra.mxu0 %v164
  %189 = vmatpush.msra.mxu0 %v163
  %190 = vmatpush.msra.mxu0 %v162
  %191 = vmatpush.msra.mxu0 %v161
  %192 = vmatpush.msra.mxu0 %v160
  %193 = vmatmul.f32.gmra.mxu0 %v172
  %v194 = vpop.f32.mrf.mxu0
  %v195 = vadd.f32 %v168, %v194
  %196 = vmatmul.f32.gmra.mxu0 %v175
  %v197 = vpop.f32.mrf.mxu0
  %v198 = vadd.f32 %v168, %v197
  %199 = vdwg.mxu0
  %vm200 = vcmp.gt.f32.partialorder %v195, 0.0
  %vm201 = vcmp.gt.f32.partialorder %v198, 0.0
  %v202 = vmul.f32 %v195, 0.01
  %v203 = vmul.f32 %v198, 0.01
  %v204 = vsel %vm200, %v195, %v202
  %v205 = vsel %vm201, %v198, %v203
  %206 = vmatpush.msra.mxu0 0.0
  %207 = vmatpush.msra.mxu0 0.0
  %208 = vmatpush.msra.mxu0 0.0
  %209 = vmatpush.msra.mxu0 0.0
  %210 = vmatpush.msra.mxu0 0.0
  %211 = vmatpush.msra.mxu0 0.0
  %212 = vmatpush.msra.mxu0 0.0
  %213 = vmatpush.msra.mxu0 0.0
  %214 = vmatpush.msra.mxu0 0.0
  %215 = vmatpush.msra.mxu0 0.0
  %216 = vmatpush.msra.mxu0 0.0
  %217 = vmatpush.msra.mxu0 0.0
  %218 = vmatpush.msra.mxu0 0.0
  %219 = vmatpush.msra.mxu0 0.0
  %220 = vmatpush.msra.mxu0 0.0
  %221 = vmatpush.msra.mxu0 %v204
  %222 = vmatmul.f32.gmra.mxu0 %v47
  %v223 = vpop.f32.mrf.mxu0
  %v224 = vadd.f32 0.0, %v223
  %225 = vdwg.mxu0
  %226 = vmatpush.msra.mxu0 0.0
  %227 = vmatpush.msra.mxu0 0.0
  %228 = vmatpush.msra.mxu0 0.0
  %229 = vmatpush.msra.mxu0 0.0
  %230 = vmatpush.msra.mxu0 0.0
  %231 = vmatpush.msra.mxu0 0.0
  %232 = vmatpush.msra.mxu0 0.0
  %233 = vmatpush.msra.mxu0 0.0
  %234 = vmatpush.msra.mxu0 0.0
  %235 = vmatpush.msra.mxu0 0.0
  %236 = vmatpush.msra.mxu0 0.0
  %237 = vmatpush.msra.mxu0 0.0
  %238 = vmatpush.msra.mxu0 0.0
  %239 = vmatpush.msra.mxu0 0.0
  %240 = vmatpush.msra.mxu0 0.0
  %241 = vmatpush.msra.mxu0 %v204
  %242 = vmatmul.f32.gmra.mxu0 %v70
  %v243 = vpop.f32.mrf.mxu0
  %v244 = vadd.f32 0.0, %v243
  %245 = vdwg.mxu0
  %246 = vmatpush.msra.mxu0 0.0
  %247 = vmatpush.msra.mxu0 0.0
  %248 = vmatpush.msra.mxu0 0.0
  %249 = vmatpush.msra.mxu0 0.0
  %250 = vmatpush.msra.mxu0 0.0
  %251 = vmatpush.msra.mxu0 0.0
  %252 = vmatpush.msra.mxu0 0.0
  %253 = vmatpush.msra.mxu0 0.0
  %254 = vmatpush.msra.mxu0 0.0
  %255 = vmatpush.msra.mxu0 0.0
  %256 = vmatpush.msra.mxu0 0.0
  %257 = vmatpush.msra.mxu0 0.0
  %258 = vmatpush.msra.mxu0 0.0
  %259 = vmatpush.msra.mxu0 0.0
  %260 = vmatpush.msra.mxu0 0.0
  %261 = vmatpush.msra.mxu0 %v205
  %262 = vmatmul.f32.gmra.mxu0 %v93
  %v263 = vpop.f32.mrf.mxu0
  %v264 = vadd.f32 0.0, %v263
  %265 = vdwg.mxu0
  %266 = vmatpush.msra.mxu0 0.0
  %267 = vmatpush.msra.mxu0 0.0
  %268 = vmatpush.msra.mxu0 0.0
  %269 = vmatpush.msra.mxu0 0.0
  %270 = vmatpush.msra.mxu0 0.0
  %271 = vmatpush.msra.mxu0 0.0
  %272 = vmatpush.msra.mxu0 0.0
  %273 = vmatpush.msra.mxu0 0.0
  %274 = vmatpush.msra.mxu0 0.0
  %275 = vmatpush.msra.mxu0 0.0
  %276 = vmatpush.msra.mxu0 0.0
  %277 = vmatpush.msra.mxu0 0.0
  %278 = vmatpush.msra.mxu0 0.0
  %279 = vmatpush.msra.mxu0 0.0
  %280 = vmatpush.msra.mxu0 0.0
  %281 = vmatpush.msra.mxu0 %v205
  %282 = vmatmul.f32.gmra.mxu0 %v116
  %v283 = vpop.f32.mrf.mxu0
  %v284 = vadd.f32 0.0, %v283
  %285 = vdwg.mxu0
  %288 = vrot.lane.b32.xlu0 %v244, 32
  %v289 = vpop.permute.xlu0 %288
  %290 = vrot.lane.b32.xlu0 %v284, 32
  %v291 = vpop.permute.xlu0 %290
  %296 = vrot.lane.b32.xlu0 %v204, 64
  %v297 = vpop.permute.xlu0 %296
  %298 = vrot.lane.b32.xlu0 %v205, 64
  %v299 = vpop.permute.xlu0 %298
  %v302 = vsel %vm157, %v224, %v289
  %v303 = vsel %vm157, %v264, %v291
  %vm304 = vcmask 523264
  %v305 = vsel %vm304, %v302, %v297
  %v306 = vsel %vm304, %v303, %v299
  %v307 = vld [vmem:[%s6] sm:$0xff]
  %v308 = vld [vmem:[%s6 + $0x8] sm:$0xff]
  %v309 = vld [vmem:[%s6 + $0x10] sm:$0xff]
  %v310 = vld [vmem:[%s6 + $0x18] sm:$0xff]
  %v311 = vld [vmem:[%s6 + $0x20] sm:$0xff]
  %v312 = vld [vmem:[%s6 + $0x28] sm:$0xff]
  %v313 = vld [vmem:[%s6 + $0x30] sm:$0xff]
  %v314 = vld [vmem:[%s6 + $0x38] sm:$0xff]
  %v315 = vld [vmem:[%s6 + $0x40] sm:$0xff]
  %v316 = vld [vmem:[%s6 + $0x48] sm:$0xff]
  %v317 = vld [vmem:[%s6 + $0x50] sm:$0xff]
  %v318 = vld [vmem:[%s6 + $0x58] sm:$0xff]
  %v319 = vld [vmem:[%s7] sm:$0x1]
  %v321 = vperm.slane %v319, 0
  %vm323 = vcmask 785408
  %v325 = vsel %vm323, %v305, 0
  %v328 = vsel %vm323, %v306, 0
  %330 = vmatpush.msra.mxu0 0.0
  %331 = vmatpush.msra.mxu0 0.0
  %332 = vmatpush.msra.mxu0 0.0
  %333 = vmatpush.msra.mxu0 0.0
  %334 = vmatpush.msra.mxu0 %v318
  %335 = vmatpush.msra.mxu0 %v317
  %336 = vmatpush.msra.mxu0 %v316
  %337 = vmatpush.msra.mxu0 %v315
  %338 = vmatpush.msra.mxu0 %v314
  %339 = vmatpush.msra.mxu0 %v313
  %340 = vmatpush.msra.mxu0 %v312
  %341 = vmatpush.msra.mxu0 %v311
  %342 = vmatpush.msra.mxu0 %v310
  %343 = vmatpush.msra.mxu0 %v309
  %344 = vmatpush.msra.mxu0 %v308
  %345 = vmatpush.msra.mxu0 %v307
  %346 = vmatmul.f32.gmra.mxu0 %v325
  %v347 = vpop.f32.mrf.mxu0
  %v348 = vadd.f32 %v321, %v347
  %349 = vmatmul.f32.gmra.mxu0 %v328
  %v350 = vpop.f32.mrf.mxu0
  %v351 = vadd.f32 %v321, %v350
  %352 = vdwg.mxu0
  %vm353 = vcmp.gt.f32.partialorder %v348, 0.0
  %vm354 = vcmp.gt.f32.partialorder %v351, 0.0
  %v355 = vmul.f32 %v348, 0.01
  %v356 = vmul.f32 %v351, 0.01
  %v357 = vsel %vm353, %v348, %v355
  %v358 = vsel %vm354, %v351, %v356
  %359 = vmatpush.msra.mxu0 0.0
  %360 = vmatpush.msra.mxu0 0.0
  %361 = vmatpush.msra.mxu0 0.0
  %362 = vmatpush.msra.mxu0 0.0
  %363 = vmatpush.msra.mxu0 0.0
  %364 = vmatpush.msra.mxu0 0.0
  %365 = vmatpush.msra.mxu0 0.0
  %366 = vmatpush.msra.mxu0 0.0
  %367 = vmatpush.msra.mxu0 0.0
  %368 = vmatpush.msra.mxu0 0.0
  %369 = vmatpush.msra.mxu0 0.0
  %370 = vmatpush.msra.mxu0 0.0
  %371 = vmatpush.msra.mxu0 0.0
  %372 = vmatpush.msra.mxu0 0.0
  %373 = vmatpush.msra.mxu0 0.0
  %374 = vmatpush.msra.mxu0 %v357
  %375 = vmatmul.f32.gmra.mxu0 %v47
  %v376 = vpop.f32.mrf.mxu0
  %v377 = vadd.f32 0.0, %v376
  %378 = vdwg.mxu0
  %379 = vmatpush.msra.mxu0 0.0
  %380 = vmatpush.msra.mxu0 0.0
  %381 = vmatpush.msra.mxu0 0.0
  %382 = vmatpush.msra.mxu0 0.0
  %383 = vmatpush.msra.mxu0 0.0
  %384 = vmatpush.msra.mxu0 0.0
  %385 = vmatpush.msra.mxu0 0.0
  %386 = vmatpush.msra.mxu0 0.0
  %387 = vmatpush.msra.mxu0 0.0
  %388 = vmatpush.msra.mxu0 0.0
  %389 = vmatpush.msra.mxu0 0.0
  %390 = vmatpush.msra.mxu0 0.0
  %391 = vmatpush.msra.mxu0 0.0
  %392 = vmatpush.msra.mxu0 0.0
  %393 = vmatpush.msra.mxu0 0.0
  %394 = vmatpush.msra.mxu0 %v357
  %395 = vmatmul.f32.gmra.mxu0 %v70
  %v396 = vpop.f32.mrf.mxu0
  %v397 = vadd.f32 0.0, %v396
  %398 = vdwg.mxu0
  %399 = vmatpush.msra.mxu0 0.0
  %400 = vmatpush.msra.mxu0 0.0
  %401 = vmatpush.msra.mxu0 0.0
  %402 = vmatpush.msra.mxu0 0.0
  %403 = vmatpush.msra.mxu0 0.0
  %404 = vmatpush.msra.mxu0 0.0
  %405 = vmatpush.msra.mxu0 0.0
  %406 = vmatpush.msra.mxu0 0.0
  %407 = vmatpush.msra.mxu0 0.0
  %408 = vmatpush.msra.mxu0 0.0
  %409 = vmatpush.msra.mxu0 0.0
  %410 = vmatpush.msra.mxu0 0.0
  %411 = vmatpush.msra.mxu0 0.0
  %412 = vmatpush.msra.mxu0 0.0
  %413 = vmatpush.msra.mxu0 0.0
  %414 = vmatpush.msra.mxu0 %v358
  %415 = vmatmul.f32.gmra.mxu0 %v93
  %v416 = vpop.f32.mrf.mxu0
  %v417 = vadd.f32 0.0, %v416
  %418 = vdwg.mxu0
  %419 = vmatpush.msra.mxu0 0.0
  %420 = vmatpush.msra.mxu0 0.0
  %421 = vmatpush.msra.mxu0 0.0
  %422 = vmatpush.msra.mxu0 0.0
  %423 = vmatpush.msra.mxu0 0.0
  %424 = vmatpush.msra.mxu0 0.0
  %425 = vmatpush.msra.mxu0 0.0
  %426 = vmatpush.msra.mxu0 0.0
  %427 = vmatpush.msra.mxu0 0.0
  %428 = vmatpush.msra.mxu0 0.0
  %429 = vmatpush.msra.mxu0 0.0
  %430 = vmatpush.msra.mxu0 0.0
  %431 = vmatpush.msra.mxu0 0.0
  %432 = vmatpush.msra.mxu0 0.0
  %433 = vmatpush.msra.mxu0 0.0
  %434 = vmatpush.msra.mxu0 %v358
  %435 = vmatmul.f32.gmra.mxu0 %v116
  %v436 = vpop.f32.mrf.mxu0
  %v437 = vadd.f32 0.0, %v436
  %438 = vdwg.mxu0
  %441 = vrot.lane.b32.xlu0 %v397, 32
  %v442 = vpop.permute.xlu0 %441
  %443 = vrot.lane.b32.xlu0 %v437, 32
  %v444 = vpop.permute.xlu0 %443
  %449 = vrot.lane.b32.xlu0 %v357, 64
  %v450 = vpop.permute.xlu0 %449
  %451 = vrot.lane.b32.xlu0 %v358, 64
  %v452 = vpop.permute.xlu0 %451
  %v455 = vsel %vm157, %v377, %v442
  %v456 = vsel %vm157, %v417, %v444
  %v457 = vsel %vm304, %v455, %v450
  %v458 = vsel %vm304, %v456, %v452
  %v459 = vld [vmem:[%s8] sm:$0xff]
  %v460 = vld [vmem:[%s8 + $0x8] sm:$0xff]
  %v461 = vld [vmem:[%s8 + $0x10] sm:$0xff]
  %v462 = vld [vmem:[%s8 + $0x18] sm:$0xff]
  %v463 = vld [vmem:[%s8 + $0x20] sm:$0xff]
  %v464 = vld [vmem:[%s8 + $0x28] sm:$0xff]
  %v465 = vld [vmem:[%s8 + $0x30] sm:$0xff]
  %v466 = vld [vmem:[%s8 + $0x38] sm:$0xff]
  %v467 = vld [vmem:[%s8 + $0x40] sm:$0xff]
  %v468 = vld [vmem:[%s8 + $0x48] sm:$0xff]
  %v469 = vld [vmem:[%s8 + $0x50] sm:$0xff]
  %v470 = vld [vmem:[%s8 + $0x58] sm:$0xff]
  %v471 = vld [vmem:[%s9] sm:$0x1]
  %v473 = vperm.slane %v471, 0
  %v476 = vsel %vm323, %v457, 0
  %v479 = vsel %vm323, %v458, 0
  %481 = vmatpush.msra.mxu0 0.0
  %482 = vmatpush.msra.mxu0 0.0
  %483 = vmatpush.msra.mxu0 0.0
  %484 = vmatpush.msra.mxu0 0.0
  %485 = vmatpush.msra.mxu0 %v470
  %486 = vmatpush.msra.mxu0 %v469
  %487 = vmatpush.msra.mxu0 %v468
  %488 = vmatpush.msra.mxu0 %v467
  %489 = vmatpush.msra.mxu0 %v466
  %490 = vmatpush.msra.mxu0 %v465
  %491 = vmatpush.msra.mxu0 %v464
  %492 = vmatpush.msra.mxu0 %v463
  %493 = vmatpush.msra.mxu0 %v462
  %494 = vmatpush.msra.mxu0 %v461
  %495 = vmatpush.msra.mxu0 %v460
  %496 = vmatpush.msra.mxu0 %v459
  %497 = vmatmul.f32.gmra.mxu0 %v476
  %v498 = vpop.f32.mrf.mxu0
  %v499 = vadd.f32 %v473, %v498
  %500 = vmatmul.f32.gmra.mxu0 %v479
  %v501 = vpop.f32.mrf.mxu0
  %v502 = vadd.f32 %v473, %v501
  %503 = vdwg.mxu0
  %v504 = vtanh.pop %v499
  %v505 = vtanh.pop %v502
  %v506 = vadd.f32 %v504, 1.0
  %v507 = vadd.f32 %v505, 1.0
  %v508 = vmul.f32 %v506, 6.0
  %v509 = vmul.f32 %v507, 6.0
  %v510 = vadd.f32 %v508, -10.0
  %v511 = vadd.f32 %v509, -10.0
  %v512 = vld [vmem:[%s3] sm:$0xff]
  %v513 = vld [vmem:[%s3 + $0x8] sm:$0xff]
  %v514 = vmul.f32 %v510, 1.442695
  %v515 = vpow.pop %v514
  %v516 = vmul.f32 %v511, 1.442695
  %v517 = vpow.pop %v516
  %520 = vrot.lane.b32.xlu0 %v515, 124
  %v521 = vpop.permute.xlu0 %520
  %522 = vrot.lane.b32.xlu0 %v517, 124
  %v523 = vpop.permute.xlu0 %522
  %v526 = vmul.f32 %v512, %v521
  %v527 = vmul.f32 %v513, %v523
  %v528 = vadd.f32 %v499, %v526
  %v529 = vadd.f32 %v502, %v527
  %v530 = vtanh.pop %v528
  %v531 = vtanh.pop %v529
  %vm532 = vcmask 31744
  %533 = vst.msk [vmem:[%s10] sm:$0xff] %vm532, %v530
  %534 = vst.msk [vmem:[%s10 + $0x8] sm:$0xff] %vm532, %v531
  // Predicated region
  $region42: #{tpu_custom_call.1} parent=0 // pred_check
    _
  $region43: #{tpu_custom_call.1} parent=0 // pred_check_branch
    %536 = sbr.rel (0) target = $region45
  $region44: #{tpu_custom_call.1} parent=0 // pred_region
    _
  $region45: #{tpu_custom_call.1} parent=0 // pred_fallthru
    _
  // Predicated region
  $region46: #{tpu_custom_call.1} parent=0 // pred_check
    _
  $region47: #{tpu_custom_call.1} parent=0 // pred_check_branch
    %538 = sbr.rel (0) target = $region49
  $region48: #{tpu_custom_call.1} parent=0 // pred_region
    _
  $region49: #{tpu_custom_call.1} parent=0 // pred_fallthru
    _

</llo_original>
